<compile_context>
chip_gen: v7x
topology: tpu7x:2x2x1
jax: 0.10.0
libtpu: 0.0.40
codegen_flags: <defaults>
</compile_context>

<pallas_src>
import functools
import math

import jax
import jax.numpy as jnp
from jax.experimental import pallas as pl
from jax.experimental.pallas import tpu as pltpu


def _gelu_tanh(z):
    # tanh-approx GELU (PyTorch F.gelu(approximate='tanh')): the tanh goes to
    # the EUP slot instead of a ~10-op f32 erf polynomial on the VALU.
    c = 0.7978845608028654  # sqrt(2/pi)
    return 0.5 * z * (1.0 + jnp.tanh(c * (z + 0.044715 * (z * z * z))))


def _trafo_block_kernel(x_ref, amask_ref, hmq_ref, hmv_ref,
                        wvt_ref, wot_ref, bo_ref,
                        g1_ref, be1_ref, g2_ref, be2_ref,
                        w1t_ref, bf1_ref, w2t_ref, bf2_ref,
                        o_ref, *, ln_eps):
    f32 = jnp.float32
    bf16 = jnp.bfloat16

    x = x_ref[...].astype(f32)                     # (R, E) rows of (packed) sequences
    R, E = x.shape
    H = hmq_ref.shape[0]

    def layer_norm(z, g_ref, b_ref):
        mu = jnp.mean(z, axis=-1, keepdims=True)
        zc = z - mu
        var = jnp.mean(zc * zc, axis=-1, keepdims=True)
        return zc * jax.lax.rsqrt(var + ln_eps) * g_ref[...].astype(f32) + b_ref[...].astype(f32)

    # ---------------- LN1 ----------------
    x_ln1 = layer_norm(x, g1_ref, be1_ref)
    x_ln1_bf = x_ln1.astype(bf16)

    # ---------------- V projection (one matmul for all rows) ----------------
    v = jnp.dot(x_ln1_bf, wvt_ref[...], preferred_element_type=f32)          # (R, E)

    # ---------------- head-fused attention ----------------
    # hmq: (H,1,E) with value 1/sqrt(D) on the head's own columns, 0 elsewhere
    # (scale folded into the constant).  Masking only the Q side is exact
    # because the mask is 0/1 per column and Q == K, so a single shared,
    # unmasked x_ln1 serves as the K operand for every head.
    qh = (x_ln1[None, :, :] * hmq_ref[...]).astype(bf16)                     # (H, R, E)
    s = jnp.einsum("qe,ke->qk", qh.reshape(H * R, E), x_ln1_bf,
                   preferred_element_type=f32).reshape(H, R, R)
    # precomputed additive mask: 0 where attention is allowed, -1e30 otherwise
    s = s + amask_ref[...][None, :, :]

    m = jnp.max(s, axis=-1, keepdims=True)
    p = jnp.exp(s - m)
    p = p * pl.reciprocal(jnp.sum(p, axis=-1, keepdims=True), approx=True)

    # V-side head selection (0/1 mask) applied in f32, cast to bf16 once.
    vh = (v[None, :, :] * hmv_ref[...]).astype(bf16)                         # (H, R, E)
    o_heads = jnp.einsum("hqk,hke->hqe", p.astype(bf16), vh,
                         preferred_element_type=f32)                         # (H, R, E)
    attn = jnp.sum(o_heads, axis=0)                 # heads occupy disjoint columns

    # ---------------- output projection ----------------
    x_atn = jnp.dot(attn.astype(bf16), wot_ref[...],
                    preferred_element_type=f32) + bo_ref[...].astype(f32)

    # ---------------- LN2 + feed-forward + residual ----------------
    x_ln2 = layer_norm(x_atn, g2_ref, be2_ref)
    h1 = jnp.dot(x_ln2.astype(bf16), w1t_ref[...],
                 preferred_element_type=f32) + bf1_ref[...].astype(f32)      # (R, FF)
    h1 = _gelu_tanh(h1)
    h2 = jnp.dot(h1.astype(bf16), w2t_ref[...],
                 preferred_element_type=f32) + bf2_ref[...].astype(f32)      # (R, E)

    o_ref[...] = (x + h2).astype(o_ref.dtype)       # residual from ORIGINAL xs


def _has_two_tensorcores():
    """v7x packs 2 TensorCores per chip -> worth sharding the batch grid axis."""
    try:
        kind = jax.devices()[0].device_kind.lower()
    except Exception:
        return False
    return ("v7" in kind) or ("tpu7" in kind) or ("7x" in kind)


def prepare_params(params, *, num_heads):
    """One-time transform of PyTorch-convention params into kernel-ready form
    (pre-transposed bf16 weights, f32 row-vector biases, folded V bias,
    scale-folded head masks).  Call once; do NOT call per forward pass."""
    f32, bf16 = jnp.float32, jnp.bfloat16
    E = params["w_v"].shape[0]
    FF = params["w_ff1"].shape[0]
    assert E % num_heads == 0
    D = E // num_heads
    scale = 1.0 / math.sqrt(D)

    bo = jnp.asarray(params["b_out"], f32).reshape(1, E)
    b_v = params.get("b_v", None)
    if b_v is not None:
        # Softmax rows sum to 1, so a V bias passes through attention unchanged
        # and folds exactly into the output-projection bias.
        bo = bo + jnp.asarray(b_v, f32).reshape(1, E) @ jnp.asarray(params["w_out"], f32).T

    head_ids = jnp.arange(num_heads, dtype=jnp.int32)[:, None, None]
    col_ids = jnp.arange(E, dtype=jnp.int32)[None, None, :]
    hm = (col_ids // D == head_ids).astype(f32)     # (H,1,E) exact 0/1
    return dict(
        wvt=jnp.asarray(params["w_v"].T, dtype=bf16),       # (E, E)
        wot=jnp.asarray(params["w_out"].T, dtype=bf16),      # (E, E)
        w1t=jnp.asarray(params["w_ff1"].T, dtype=bf16),      # (E, FF)
        w2t=jnp.asarray(params["w_ff2"].T, dtype=bf16),      # (FF, E)
        bo=bo,
        g1=jnp.asarray(params["ln1_g"], f32).reshape(1, E),
        be1=jnp.asarray(params["ln1_b"], f32).reshape(1, E),
        g2=jnp.asarray(params["ln2_g"], f32).reshape(1, E),
        be2=jnp.asarray(params["ln2_b"], f32).reshape(1, E),
        bf1=jnp.asarray(params["b_ff1"], f32).reshape(1, FF),
        bf2=jnp.asarray(params["b_ff2"], f32).reshape(1, E),
        hm_q=hm * scale,                                     # Q-side mask with 1/sqrt(D) folded in
        hm_v=hm,                                             # exact 0/1 for V-side head selection
    )


def trafo_block(xs, prep, *, num_heads, is_causal, ln_eps=1e-5, per_batch_grid=None):
    """xs: (B, T, E).  `prep` is the output of prepare_params()."""
    B, T, E = xs.shape
    assert E % num_heads == 0
    H = num_heads
    FF = prep["w1t"].shape[1]
    BT = B * T

    if per_batch_grid is None:
        per_batch_grid = _has_two_tensorcores()     # shard batch over cores on v7x
    if T % 8 != 0 or B == 1:
        per_batch_grid = False                      # need a legal (8,·) row tile per batch

    R = T if per_batch_grid else BT                 # rows per grid step

    # Precomputed additive attention mask (0 allowed / -1e30 forbidden), shared
    # by all heads.  Per-batch grid -> pure causal; fused grid -> packed
    # sequences (block-diagonal) + optional causal.
    rows = jnp.arange(R, dtype=jnp.int32)
    if per_batch_grid:
        allowed = (rows[None, :] <= rows[:, None]) if is_causal else jnp.ones((R, R), bool)
    else:
        same_seq = (rows[:, None] // T) == (rows[None, :] // T)
        allowed = jnp.logical_and(same_seq, rows[None, :] <= rows[:, None]) if is_causal else same_seq
    amask = jnp.where(allowed, 0.0, -1e30).astype(jnp.float32)

    x2 = xs.reshape(BT, E)                          # fold batch into rows (free in XLA)

    if per_batch_grid:
        grid = (B,)
        x_spec = pl.BlockSpec((R, E), lambda b: (b, 0))
        o_spec = pl.BlockSpec((R, E), lambda b: (b, 0))
        sem = ("parallel",)
    else:
        grid = (1,)
        x_spec = pl.BlockSpec((R, E), lambda i: (0, 0))
        o_spec = pl.BlockSpec((R, E), lambda i: (0, 0))
        sem = ("arbitrary",)

    c2 = lambda shp: pl.BlockSpec(shp, lambda i: (0, 0))        # grid-invariant 2-D operand
    c3 = lambda shp: pl.BlockSpec(shp, lambda i: (0, 0, 0))     # grid-invariant 3-D operand

    kernel = functools.partial(_trafo_block_kernel, ln_eps=ln_eps)

    out2 = pl.pallas_call(
        kernel,
        out_shape=jax.ShapeDtypeStruct((BT, E), xs.dtype),
        grid_spec=pltpu.PrefetchScalarGridSpec(
            num_scalar_prefetch=0,
            grid=grid,
            in_specs=[
                x_spec,                       # xs rows
                c2((R, R)),                   # additive attention mask
                c3((H, 1, E)),                # Q-side head mask (scale folded, f32)
                c3((H, 1, E)),                # V-side head mask (0/1, f32)
                c2((E, E)),                   # Wv^T (bf16)
                c2((E, E)),                   # Wo^T (bf16)
                c2((1, E)),                   # bo (+ folded bv)
                c2((1, E)),                   # LN1 gamma
                c2((1, E)),                   # LN1 beta
                c2((1, E)),                   # LN2 gamma
                c2((1, E)),                   # LN2 beta
                c2((E, FF)),                  # W1^T (bf16)
                c2((1, FF)),                  # b1
                c2((FF, E)),                  # W2^T (bf16)
                c2((1, E)),                   # b2
            ],
            out_specs=o_spec,
        ),
        compiler_params=pltpu.CompilerParams(dimension_semantics=sem),
    )(x2, amask, prep["hm_q"], prep["hm_v"], prep["wvt"], prep["wot"], prep["bo"],
      prep["g1"], prep["be1"], prep["g2"], prep["be2"],
      prep["w1t"], prep["bf1"], prep["w2t"], prep["bf2"])

    return out2.reshape(B, T, E)


def _reference(xs, params, *, num_heads, is_causal, ln_eps=1e-5):
    """Pure-JAX f32 reference matching the PyTorch TrafoBlock forward."""
    B, T, E = xs.shape
    D = E // num_heads

    def ln(z, g, b):
        mu = jnp.mean(z, axis=-1, keepdims=True)
        var = jnp.mean((z - mu) ** 2, axis=-1, keepdims=True)
        return (z - mu) / jnp.sqrt(var + ln_eps) * g + b

    x_ln1 = ln(xs, params["ln1_g"], params["ln1_b"])

    v = x_ln1 @ params["w_v"].T
    if params.get("b_v", None) is not None:
        v = v + params["b_v"]
    q = x_ln1.reshape(B, T, num_heads, D).transpose(0, 2, 1, 3)
    vh = v.reshape(B, T, num_heads, D).transpose(0, 2, 1, 3)
    s = jnp.einsum("bhqd,bhkd->bhqk", q, q) / math.sqrt(D)
    if is_causal:
        mask = jnp.tril(jnp.ones((T, T), dtype=bool))
        s = jnp.where(mask, s, -jnp.inf)
    p = jax.nn.softmax(s, axis=-1)
    a = jnp.einsum("bhqk,bhkd->bhqd", p, vh)
    a = a.transpose(0, 2, 1, 3).reshape(B, T, E)
    x_atn = a @ params["w_out"].T + params["b_out"]

    x_ln2 = ln(x_atn, params["ln2_g"], params["ln2_b"])
    h1 = jax.nn.gelu(x_ln2 @ params["w_ff1"].T + params["b_ff1"], approximate=False)
    h2 = h1 @ params["w_ff2"].T + params["b_ff2"]
    return xs + h2


if __name__ == "__main__":
    # cfg: ctx_size=8, embed_dim=32, num_heads=4 (head_dim=8), ff_dim=128,
    #      num_blocks=2, qkv_bias=False, is_causal=True
    B, T, E, H, FF = 2, 8, 32, 4, 128
    NUM_BLOCKS = 2
    IS_CAUSAL = True

    key = jax.random.PRNGKey(0)
    ks = jax.random.split(key, 12)

    xs = jax.random.normal(ks[0], (B, T, E), dtype=jnp.float32)

    proj_std = 0.02 / math.sqrt(2 * NUM_BLOCKS)     # GPT-2 scaled-residual init
    params = dict(
        ln1_g=1.0 + 0.1 * jax.random.normal(ks[1], (E,), jnp.float32),
        ln1_b=0.1 * jax.random.normal(ks[2], (E,), jnp.float32),
        w_v=0.1 * jax.random.normal(ks[3], (E, E), jnp.float32),
        b_v=None,                                   # qkv_bias=False
        w_out=proj_std * jax.random.normal(ks[4], (E, E), jnp.float32),
        b_out=0.1 * jax.random.normal(ks[5], (E,), jnp.float32),
        ln2_g=1.0 + 0.1 * jax.random.normal(ks[6], (E,), jnp.float32),
        ln2_b=0.1 * jax.random.normal(ks[7], (E,), jnp.float32),
        w_ff1=0.1 * jax.random.normal(ks[8], (FF, E), jnp.float32),
        b_ff1=0.1 * jax.random.normal(ks[9], (FF,), jnp.float32),
        w_ff2=proj_std * jax.random.normal(ks[10], (E, FF), jnp.float32),
        b_ff2=0.05 * jax.random.normal(ks[11], (E,), jnp.float32),
    )

    # One-time weight transform (transposes / bf16 casts hoisted off the hot
    # path), then a jitted forward so wrapper-side glue fuses with the launch.
    prep = prepare_params(params, num_heads=H)
    fwd = jax.jit(functools.partial(trafo_block, num_heads=H, is_causal=IS_CAUSAL))

    out = fwd(xs, prep)
    out = jax.block_until_ready(out)

    ref = _reference(xs, params, num_heads=H, is_causal=IS_CAUSAL)

    assert out.shape == (B, T, E)
    max_err = jnp.max(jnp.abs(out - ref))
    assert jnp.allclose(out, ref, atol=2e-2, rtol=2e-2), f"max abs err = {max_err}"
    print("KERNEL_OK")
</pallas_src>

<mosaic_0001>
module attributes {stable_mosaic.version = 11 : i64} {
  func.func @_trafo_block_kernel(%arg0: i32, %arg1: memref<16x32xf32, #tpu.memory_space<vmem>>, %arg2: memref<16x16xf32, #tpu.memory_space<vmem>>, %arg3: memref<4x1x32xf32, #tpu.memory_space<vmem>>, %arg4: memref<4x1x32xf32, #tpu.memory_space<vmem>>, %arg5: memref<32x32xbf16, #tpu.memory_space<vmem>>, %arg6: memref<32x32xbf16, #tpu.memory_space<vmem>>, %arg7: memref<1x32xf32, #tpu.memory_space<vmem>>, %arg8: memref<1x32xf32, #tpu.memory_space<vmem>>, %arg9: memref<1x32xf32, #tpu.memory_space<vmem>>, %arg10: memref<1x32xf32, #tpu.memory_space<vmem>>, %arg11: memref<1x32xf32, #tpu.memory_space<vmem>>, %arg12: memref<32x128xbf16, #tpu.memory_space<vmem>>, %arg13: memref<1x128xf32, #tpu.memory_space<vmem>>, %arg14: memref<128x32xbf16, #tpu.memory_space<vmem>>, %arg15: memref<1x32xf32, #tpu.memory_space<vmem>>, %arg16: memref<16x32xf32, #tpu.memory_space<vmem>>) attributes {dimension_semantics = [#tpu.dimension_semantics<arbitrary>], iteration_bounds = array<i64: 1>, scalar_prefetch = 0 : i64, scratch_operands = 0 : i64, tpu.core_type = #tpu.core_type<tc>, window_params = [{pipeline_mode = #tpu.pipeline_mode<synchronous>, transform_indices = @transform_0, window_bounds = array<i64: 16, 32>}, {pipeline_mode = #tpu.pipeline_mode<synchronous>, transform_indices = @transform_1, window_bounds = array<i64: 16, 16>}, {pipeline_mode = #tpu.pipeline_mode<synchronous>, transform_indices = @transform_2, window_bounds = array<i64: 4, 1, 32>}, {pipeline_mode = #tpu.pipeline_mode<synchronous>, transform_indices = @transform_3, window_bounds = array<i64: 4, 1, 32>}, {pipeline_mode = #tpu.pipeline_mode<synchronous>, transform_indices = @transform_4, window_bounds = array<i64: 32, 32>}, {pipeline_mode = #tpu.pipeline_mode<synchronous>, transform_indices = @transform_5, window_bounds = array<i64: 32, 32>}, {pipeline_mode = #tpu.pipeline_mode<synchronous>, transform_indices = @transform_6, window_bounds = array<i64: 1, 32>}, {pipeline_mode = #tpu.pipeline_mode<synchronous>, transform_indices = @transform_7, window_bounds = array<i64: 1, 32>}, {pipeline_mode = #tpu.pipeline_mode<synchronous>, transform_indices = @transform_8, window_bounds = array<i64: 1, 32>}, {pipeline_mode = #tpu.pipeline_mode<synchronous>, transform_indices = @transform_9, window_bounds = array<i64: 1, 32>}, {pipeline_mode = #tpu.pipeline_mode<synchronous>, transform_indices = @transform_10, window_bounds = array<i64: 1, 32>}, {pipeline_mode = #tpu.pipeline_mode<synchronous>, transform_indices = @transform_11, window_bounds = array<i64: 32, 128>}, {pipeline_mode = #tpu.pipeline_mode<synchronous>, transform_indices = @transform_12, window_bounds = array<i64: 1, 128>}, {pipeline_mode = #tpu.pipeline_mode<synchronous>, transform_indices = @transform_13, window_bounds = array<i64: 128, 32>}, {pipeline_mode = #tpu.pipeline_mode<synchronous>, transform_indices = @transform_14, window_bounds = array<i64: 1, 32>}, {pipeline_mode = #tpu.pipeline_mode<synchronous>, transform_indices = @transform_15, window_bounds = array<i64: 16, 32>}]} {
    %c0 = arith.constant 0 : index
    %c0_0 = arith.constant 0 : index
    %0 = vector.load %arg1[%c0, %c0_0] : memref<16x32xf32, #tpu.memory_space<vmem>>, vector<16x32xf32>
    %cst = arith.constant dense<0.000000e+00> : vector<16xf32>
    %1 = vector.multi_reduction <add>, %0, %cst [1] : vector<16x32xf32> to vector<16xf32>
    %2 = vector.shape_cast %1 : vector<16xf32> to vector<16x1xf32>
    %cst_1 = arith.constant 3.200000e+01 : f32
    %3 = vector.broadcast %cst_1 : f32 to vector<16x1xf32>
    %4 = arith.divf %2, %3 : vector<16x1xf32>
    %5 = vector.broadcast %4 : vector<16x1xf32> to vector<16x32xf32>
    %6 = arith.subf %0, %5 : vector<16x32xf32>
    %7 = arith.mulf %6, %6 : vector<16x32xf32>
    %cst_2 = arith.constant dense<0.000000e+00> : vector<16xf32>
    %8 = vector.multi_reduction <add>, %7, %cst_2 [1] : vector<16x32xf32> to vector<16xf32>
    %9 = vector.shape_cast %8 : vector<16xf32> to vector<16x1xf32>
    %cst_3 = arith.constant 3.200000e+01 : f32
    %10 = vector.broadcast %cst_3 : f32 to vector<16x1xf32>
    %11 = arith.divf %9, %10 : vector<16x1xf32>
    %cst_4 = arith.constant 9.99999974E-6 : f32
    %12 = vector.broadcast %cst_4 : f32 to vector<16x1xf32>
    %13 = arith.addf %11, %12 : vector<16x1xf32>
    %14 = math.rsqrt %13 : vector<16x1xf32>
    %15 = vector.broadcast %14 : vector<16x1xf32> to vector<16x32xf32>
    %16 = arith.mulf %6, %15 : vector<16x32xf32>
    %c0_5 = arith.constant 0 : index
    %c0_6 = arith.constant 0 : index
    %17 = vector.load %arg8[%c0_5, %c0_6] : memref<1x32xf32, #tpu.memory_space<vmem>>, vector<1x32xf32>
    %18 = vector.broadcast %17 : vector<1x32xf32> to vector<16x32xf32>
    %19 = arith.mulf %16, %18 : vector<16x32xf32>
    %c0_7 = arith.constant 0 : index
    %c0_8 = arith.constant 0 : index
    %20 = vector.load %arg9[%c0_7, %c0_8] : memref<1x32xf32, #tpu.memory_space<vmem>>, vector<1x32xf32>
    %21 = vector.broadcast %20 : vector<1x32xf32> to vector<16x32xf32>
    %22 = arith.addf %19, %21 : vector<16x32xf32>
    %23 = arith.truncf %22 : vector<16x32xf32> to vector<16x32xbf16>
    %c0_9 = arith.constant 0 : index
    %c0_10 = arith.constant 0 : index
    %24 = vector.load %arg5[%c0_9, %c0_10] : memref<32x32xbf16, #tpu.memory_space<vmem>>, vector<32x32xbf16>
    %cst_11 = arith.constant dense<0.000000e+00> : vector<16x32xf32>
    %25 = tpu.matmul %23, %24, %cst_11 {dimension_numbers = #tpu.dot_dimension_numbers<[1], [0], [0], [1], [0, 0, 1, 1], [], []>} : vector<16x32xbf16>, vector<32x32xbf16>, vector<16x32xf32> -> vector<16x32xf32>
    %26 = vector.shape_cast %22 : vector<16x32xf32> to vector<1x16x32xf32>
    %c0_12 = arith.constant 0 : index
    %c0_13 = arith.constant 0 : index
    %c0_14 = arith.constant 0 : index
    %27 = vector.load %arg3[%c0_12, %c0_13, %c0_14] : memref<4x1x32xf32, #tpu.memory_space<vmem>>, vector<4x1x32xf32>
    %28 = vector.broadcast %26 : vector<1x16x32xf32> to vector<4x16x32xf32>
    %29 = vector.broadcast %27 : vector<4x1x32xf32> to vector<4x16x32xf32>
    %30 = arith.mulf %28, %29 : vector<4x16x32xf32>
    %31 = arith.truncf %30 : vector<4x16x32xf32> to vector<4x16x32xbf16>
    %32 = vector.shape_cast %31 : vector<4x16x32xbf16> to vector<64x32xbf16>
    "tpu.trace_start"() <{level = 10 : i32, message = "qe,ke->qk"}> : () -> ()
    %cst_15 = arith.constant dense<0.000000e+00> : vector<64x16xf32>
    %33 = tpu.matmul %32, %23, %cst_15 {dimension_numbers = #tpu.dot_dimension_numbers<[1], [1], [0], [0], [0, 0, 1, 0], [], []>} : vector<64x32xbf16>, vector<16x32xbf16>, vector<64x16xf32> -> vector<64x16xf32>
    "tpu.trace_stop"() : () -> ()
    %34 = vector.shape_cast %33 : vector<64x16xf32> to vector<4x16x16xf32>
    %c0_16 = arith.constant 0 : index
    %c0_17 = arith.constant 0 : index
    %35 = vector.load %arg2[%c0_16, %c0_17] : memref<16x16xf32, #tpu.memory_space<vmem>>, vector<16x16xf32>
    %36 = vector.shape_cast %35 : vector<16x16xf32> to vector<1x16x16xf32>
    %37 = vector.broadcast %36 : vector<1x16x16xf32> to vector<4x16x16xf32>
    %38 = arith.addf %34, %37 : vector<4x16x16xf32>
    %cst_18 = arith.constant dense<0xFF800000> : vector<4x16xf32>
    %39 = vector.multi_reduction <maximumf>, %38, %cst_18 [2] : vector<4x16x16xf32> to vector<4x16xf32>
    %40 = vector.shape_cast %39 : vector<4x16xf32> to vector<4x16x1xf32>
    %41 = vector.broadcast %40 : vector<4x16x1xf32> to vector<4x16x16xf32>
    %42 = arith.subf %38, %41 : vector<4x16x16xf32>
    %43 = math.exp %42 : vector<4x16x16xf32>
    %cst_19 = arith.constant dense<0.000000e+00> : vector<4x16xf32>
    %44 = vector.multi_reduction <add>, %43, %cst_19 [2] : vector<4x16x16xf32> to vector<4x16xf32>
    %45 = vector.shape_cast %44 : vector<4x16xf32> to vector<4x16x1xf32>
    %46 = tpu.reciprocal %45 {approx = true} : vector<4x16x1xf32> -> vector<4x16x1xf32>
    %47 = vector.broadcast %46 : vector<4x16x1xf32> to vector<4x16x16xf32>
    %48 = arith.mulf %43, %47 : vector<4x16x16xf32>
    %49 = vector.shape_cast %25 : vector<16x32xf32> to vector<1x16x32xf32>
    %c0_20 = arith.constant 0 : index
    %c0_21 = arith.constant 0 : index
    %c0_22 = arith.constant 0 : index
    %50 = vector.load %arg4[%c0_20, %c0_21, %c0_22] : memref<4x1x32xf32, #tpu.memory_space<vmem>>, vector<4x1x32xf32>
    %51 = vector.broadcast %49 : vector<1x16x32xf32> to vector<4x16x32xf32>
    %52 = vector.broadcast %50 : vector<4x1x32xf32> to vector<4x16x32xf32>
    %53 = arith.mulf %51, %52 : vector<4x16x32xf32>
    %54 = arith.truncf %53 : vector<4x16x32xf32> to vector<4x16x32xbf16>
    %55 = arith.truncf %48 : vector<4x16x16xf32> to vector<4x16x16xbf16>
    "tpu.trace_start"() <{level = 10 : i32, message = "hqk,hke->hqe"}> : () -> ()
    %cst_23 = arith.constant dense<0.000000e+00> : vector<4x16x32xf32>
    %56 = tpu.matmul %55, %54, %cst_23 {dimension_numbers = #tpu.dot_dimension_numbers<[2], [1], [1], [2], [0, 0, 0, 1, 1, 2], [0], [0]>} : vector<4x16x16xbf16>, vector<4x16x32xbf16>, vector<4x16x32xf32> -> vector<4x16x32xf32>
    "tpu.trace_stop"() : () -> ()
    %cst_24 = arith.constant dense<0.000000e+00> : vector<16x32xf32>
    %57 = vector.multi_reduction <add>, %56, %cst_24 [0] : vector<4x16x32xf32> to vector<16x32xf32>
    %58 = arith.truncf %57 : vector<16x32xf32> to vector<16x32xbf16>
    %c0_25 = arith.constant 0 : index
    %c0_26 = arith.constant 0 : index
    %59 = vector.load %arg6[%c0_25, %c0_26] : memref<32x32xbf16, #tpu.memory_space<vmem>>, vector<32x32xbf16>
    %cst_27 = arith.constant dense<0.000000e+00> : vector<16x32xf32>
    %60 = tpu.matmul %58, %59, %cst_27 {dimension_numbers = #tpu.dot_dimension_numbers<[1], [0], [0], [1], [0, 0, 1, 1], [], []>} : vector<16x32xbf16>, vector<32x32xbf16>, vector<16x32xf32> -> vector<16x32xf32>
    %c0_28 = arith.constant 0 : index
    %c0_29 = arith.constant 0 : index
    %61 = vector.load %arg7[%c0_28, %c0_29] : memref<1x32xf32, #tpu.memory_space<vmem>>, vector<1x32xf32>
    %62 = vector.broadcast %61 : vector<1x32xf32> to vector<16x32xf32>
    %63 = arith.addf %60, %62 : vector<16x32xf32>
    %cst_30 = arith.constant dense<0.000000e+00> : vector<16xf32>
    %64 = vector.multi_reduction <add>, %63, %cst_30 [1] : vector<16x32xf32> to vector<16xf32>
    %65 = vector.shape_cast %64 : vector<16xf32> to vector<16x1xf32>
    %cst_31 = arith.constant 3.200000e+01 : f32
    %66 = vector.broadcast %cst_31 : f32 to vector<16x1xf32>
    %67 = arith.divf %65, %66 : vector<16x1xf32>
    %68 = vector.broadcast %67 : vector<16x1xf32> to vector<16x32xf32>
    %69 = arith.subf %63, %68 : vector<16x32xf32>
    %70 = arith.mulf %69, %69 : vector<16x32xf32>
    %cst_32 = arith.constant dense<0.000000e+00> : vector<16xf32>
    %71 = vector.multi_reduction <add>, %70, %cst_32 [1] : vector<16x32xf32> to vector<16xf32>
    %72 = vector.shape_cast %71 : vector<16xf32> to vector<16x1xf32>
    %cst_33 = arith.constant 3.200000e+01 : f32
    %73 = vector.broadcast %cst_33 : f32 to vector<16x1xf32>
    %74 = arith.divf %72, %73 : vector<16x1xf32>
    %cst_34 = arith.constant 9.99999974E-6 : f32
    %75 = vector.broadcast %cst_34 : f32 to vector<16x1xf32>
    %76 = arith.addf %74, %75 : vector<16x1xf32>
    %77 = math.rsqrt %76 : vector<16x1xf32>
    %78 = vector.broadcast %77 : vector<16x1xf32> to vector<16x32xf32>
    %79 = arith.mulf %69, %78 : vector<16x32xf32>
    %c0_35 = arith.constant 0 : index
    %c0_36 = arith.constant 0 : index
    %80 = vector.load %arg10[%c0_35, %c0_36] : memref<1x32xf32, #tpu.memory_space<vmem>>, vector<1x32xf32>
    %81 = vector.broadcast %80 : vector<1x32xf32> to vector<16x32xf32>
    %82 = arith.mulf %79, %81 : vector<16x32xf32>
    %c0_37 = arith.constant 0 : index
    %c0_38 = arith.constant 0 : index
    %83 = vector.load %arg11[%c0_37, %c0_38] : memref<1x32xf32, #tpu.memory_space<vmem>>, vector<1x32xf32>
    %84 = vector.broadcast %83 : vector<1x32xf32> to vector<16x32xf32>
    %85 = arith.addf %82, %84 : vector<16x32xf32>
    %86 = arith.truncf %85 : vector<16x32xf32> to vector<16x32xbf16>
    %c0_39 = arith.constant 0 : index
    %c0_40 = arith.constant 0 : index
    %87 = vector.load %arg12[%c0_39, %c0_40] : memref<32x128xbf16, #tpu.memory_space<vmem>>, vector<32x128xbf16>
    %cst_41 = arith.constant dense<0.000000e+00> : vector<16x128xf32>
    %88 = tpu.matmul %86, %87, %cst_41 {dimension_numbers = #tpu.dot_dimension_numbers<[1], [0], [0], [1], [0, 0, 1, 1], [], []>} : vector<16x32xbf16>, vector<32x128xbf16>, vector<16x128xf32> -> vector<16x128xf32>
    %c0_42 = arith.constant 0 : index
    %c0_43 = arith.constant 0 : index
    %89 = vector.load %arg13[%c0_42, %c0_43] : memref<1x128xf32, #tpu.memory_space<vmem>>, vector<1x128xf32>
    %90 = vector.broadcast %89 : vector<1x128xf32> to vector<16x128xf32>
    %91 = arith.addf %88, %90 : vector<16x128xf32>
    %cst_44 = arith.constant 5.000000e-01 : f32
    %92 = vector.broadcast %cst_44 : f32 to vector<16x128xf32>
    %93 = arith.mulf %92, %91 : vector<16x128xf32>
    %94 = arith.mulf %91, %91 : vector<16x128xf32>
    %95 = arith.mulf %94, %91 : vector<16x128xf32>
    %cst_45 = arith.constant 4.471500e-02 : f32
    %96 = vector.broadcast %cst_45 : f32 to vector<16x128xf32>
    %97 = arith.mulf %96, %95 : vector<16x128xf32>
    %98 = arith.addf %91, %97 : vector<16x128xf32>
    %cst_46 = arith.constant 0.797884583 : f32
    %99 = vector.broadcast %cst_46 : f32 to vector<16x128xf32>
    %100 = arith.mulf %99, %98 : vector<16x128xf32>
    %101 = math.tanh %100 : vector<16x128xf32>
    %cst_47 = arith.constant 1.000000e+00 : f32
    %102 = vector.broadcast %cst_47 : f32 to vector<16x128xf32>
    %103 = arith.addf %102, %101 : vector<16x128xf32>
    %104 = arith.mulf %93, %103 : vector<16x128xf32>
    %105 = arith.truncf %104 : vector<16x128xf32> to vector<16x128xbf16>
    %c0_48 = arith.constant 0 : index
    %c0_49 = arith.constant 0 : index
    %106 = vector.load %arg14[%c0_48, %c0_49] : memref<128x32xbf16, #tpu.memory_space<vmem>>, vector<128x32xbf16>
    %cst_50 = arith.constant dense<0.000000e+00> : vector<16x32xf32>
    %107 = tpu.matmul %105, %106, %cst_50 {dimension_numbers = #tpu.dot_dimension_numbers<[1], [0], [0], [1], [0, 0, 1, 1], [], []>} : vector<16x128xbf16>, vector<128x32xbf16>, vector<16x32xf32> -> vector<16x32xf32>
    %c0_51 = arith.constant 0 : index
    %c0_52 = arith.constant 0 : index
    %108 = vector.load %arg15[%c0_51, %c0_52] : memref<1x32xf32, #tpu.memory_space<vmem>>, vector<1x32xf32>
    %109 = vector.broadcast %108 : vector<1x32xf32> to vector<16x32xf32>
    %110 = arith.addf %107, %109 : vector<16x32xf32>
    %111 = arith.addf %0, %110 : vector<16x32xf32>
    %c0_53 = arith.constant 0 : index
    %c0_54 = arith.constant 0 : index
    %112 = vector.load %arg16[%c0_53, %c0_54] : memref<16x32xf32, #tpu.memory_space<vmem>>, vector<16x32xf32>
    tpu.vector_store %arg16[%c0_53, %c0_54], %111 {strides = array<i32>} : memref<16x32xf32, #tpu.memory_space<vmem>>, vector<16x32xf32>,
    return
  }
  func.func @transform_0(%arg0: i32) -> (i32, i32) {
    %c0_i32 = arith.constant 0 : i32
    %c0_i32_0 = arith.constant 0 : i32
    %c0_i32_1 = arith.constant 0 : i32
    return %c0_i32, %c0_i32_0 : i32, i32
  }
  func.func @transform_1(%arg0: i32) -> (i32, i32) {
    %c0_i32 = arith.constant 0 : i32
    %c0_i32_0 = arith.constant 0 : i32
    %c0_i32_1 = arith.constant 0 : i32
    return %c0_i32, %c0_i32_0 : i32, i32
  }
  func.func @transform_2(%arg0: i32) -> (i32, i32, i32) {
    %c0_i32 = arith.constant 0 : i32
    %c0_i32_0 = arith.constant 0 : i32
    %c0_i32_1 = arith.constant 0 : i32
    %c0_i32_2 = arith.constant 0 : i32
    return %c0_i32, %c0_i32_0, %c0_i32_1 : i32, i32, i32
  }
  func.func @transform_3(%arg0: i32) -> (i32, i32, i32) {
    %c0_i32 = arith.constant 0 : i32
    %c0_i32_0 = arith.constant 0 : i32
    %c0_i32_1 = arith.constant 0 : i32
    %c0_i32_2 = arith.constant 0 : i32
    return %c0_i32, %c0_i32_0, %c0_i32_1 : i32, i32, i32
  }
  func.func @transform_4(%arg0: i32) -> (i32, i32) {
    %c0_i32 = arith.constant 0 : i32
    %c0_i32_0 = arith.constant 0 : i32
    %c0_i32_1 = arith.constant 0 : i32
    return %c0_i32, %c0_i32_0 : i32, i32
  }
  func.func @transform_5(%arg0: i32) -> (i32, i32) {
    %c0_i32 = arith.constant 0 : i32
    %c0_i32_0 = arith.constant 0 : i32
    %c0_i32_1 = arith.constant 0 : i32
    return %c0_i32, %c0_i32_0 : i32, i32
  }
  func.func @transform_6(%arg0: i32) -> (i32, i32) {
    %c0_i32 = arith.constant 0 : i32
    %c0_i32_0 = arith.constant 0 : i32
    %c0_i32_1 = arith.constant 0 : i32
    return %c0_i32, %c0_i32_0 : i32, i32
  }
  func.func @transform_7(%arg0: i32) -> (i32, i32) {
    %c0_i32 = arith.constant 0 : i32
    %c0_i32_0 = arith.constant 0 : i32
    %c0_i32_1 = arith.constant 0 : i32
    return %c0_i32, %c0_i32_0 : i32, i32
  }
  func.func @transform_8(%arg0: i32) -> (i32, i32) {
    %c0_i32 = arith.constant 0 : i32
    %c0_i32_0 = arith.constant 0 : i32
    %c0_i32_1 = arith.constant 0 : i32
    return %c0_i32, %c0_i32_0 : i32, i32
  }
  func.func @transform_9(%arg0: i32) -> (i32, i32) {
    %c0_i32 = arith.constant 0 : i32
    %c0_i32_0 = arith.constant 0 : i32
    %c0_i32_1 = arith.constant 0 : i32
    return %c0_i32, %c0_i32_0 : i32, i32
  }
  func.func @transform_10(%arg0: i32) -> (i32, i32) {
    %c0_i32 = arith.constant 0 : i32
    %c0_i32_0 = arith.constant 0 : i32
    %c0_i32_1 = arith.constant 0 : i32
    return %c0_i32, %c0_i32_0 : i32, i32
  }
  func.func @transform_11(%arg0: i32) -> (i32, i32) {
    %c0_i32 = arith.constant 0 : i32
    %c0_i32_0 = arith.constant 0 : i32
    %c0_i32_1 = arith.constant 0 : i32
    return %c0_i32, %c0_i32_0 : i32, i32
  }
  func.func @transform_12(%arg0: i32) -> (i32, i32) {
    %c0_i32 = arith.constant 0 : i32
    %c0_i32_0 = arith.constant 0 : i32
    %c0_i32_1 = arith.constant 0 : i32
    return %c0_i32, %c0_i32_0 : i32, i32
  }
  func.func @transform_13(%arg0: i32) -> (i32, i32) {
    %c0_i32 = arith.constant 0 : i32
    %c0_i32_0 = arith.constant 0 : i32
    %c0_i32_1 = arith.constant 0 : i32
    return %c0_i32, %c0_i32_0 : i32, i32
  }
  func.func @transform_14(%arg0: i32) -> (i32, i32) {
    %c0_i32 = arith.constant 0 : i32
    %c0_i32_0 = arith.constant 0 : i32
    %c0_i32_1 = arith.constant 0 : i32
    return %c0_i32, %c0_i32_0 : i32, i32
  }
  func.func @transform_15(%arg0: i32) -> (i32, i32) {
    %c0_i32 = arith.constant 0 : i32
    %c0_i32_0 = arith.constant 0 : i32
    %c0_i32_1 = arith.constant 0 : i32
    return %c0_i32, %c0_i32_0 : i32, i32
  }
}

</mosaic_0001>

<llo_original>
// kernel: trafo_block.1
$region0: #{trafo_block.1}
  #allocation0 [shape = 'u32[]', space=smem, size = 0x4, offset = 0x4, fixed_abs, tag = 'smem constant byte address 0x4 - core index']
  #allocation1 [shape = 'u32[144,128]{1,0:T(1,128)}', space=vmem, size = 0x12000, scoped, tag = 'internal scratch']
  %s0 = inlined_call_operand.vmem [shape: f32[16,32], index: 0, kind: input, shape index: {}]
  %s1 = inlined_call_operand.vmem [shape: f32[16,16], index: 1, kind: input, shape index: {}]
  %s2 = inlined_call_operand.vmem [shape: f32[4,1,32], index: 2, kind: input, shape index: {}]
  %s3 = inlined_call_operand.vmem [shape: f32[4,1,32], index: 3, kind: input, shape index: {}]
  %s4 = inlined_call_operand.vmem [shape: bf16[32,32], index: 4, kind: input, shape index: {}]
  %s5 = inlined_call_operand.vmem [shape: bf16[32,32], index: 5, kind: input, shape index: {}]
  %s6 = inlined_call_operand.vmem [shape: f32[1,32], index: 6, kind: input, shape index: {}]
  %s7 = inlined_call_operand.vmem [shape: f32[1,32], index: 7, kind: input, shape index: {}]
  %s8 = inlined_call_operand.vmem [shape: f32[1,32], index: 8, kind: input, shape index: {}]
  %s9 = inlined_call_operand.vmem [shape: f32[1,32], index: 9, kind: input, shape index: {}]
  %s10 = inlined_call_operand.vmem [shape: f32[1,32], index: 10, kind: input, shape index: {}]
  %s11 = inlined_call_operand.vmem [shape: bf16[32,128], index: 11, kind: input, shape index: {}]
  %s12 = inlined_call_operand.vmem [shape: f32[1,128], index: 12, kind: input, shape index: {}]
  %s13 = inlined_call_operand.vmem [shape: bf16[128,32], index: 13, kind: input, shape index: {}]
  %s14 = inlined_call_operand.vmem [shape: f32[1,32], index: 14, kind: input, shape index: {}]
  %s15 = inlined_call_operand.hbm [shape: f32[16,32], index: 15, kind: output, shape index: {}]
  %s16 = sld [smem:[#allocation0]]
  $region70: #{trafo_block.1} parent=0
    _
  %s18 = ssub.s32 1, %s16
  %s19 = scalar_select 0, %s18, %s16
  $region1: #{trafo_block.1} parent=0
    #allocation2 [shape = 'u8[8192]{0}', space=vmem, size = 0x2000, scoped, tag = 'output window, operand 0, single buffered']
    #allocation3 [shape = 's32[1]{0}', space=sflag, size = 0x4, scoped, tag = 'scoped memory for trafo_block.1']
    %20 = vsyncpa [#allocation3], 0
    // Predicated region
    $region2: #{trafo_block.1} parent=1 // pred_check
      _
    $region3: #{trafo_block.1} parent=1 // pred_check_branch
      %22 = sbr.rel (0) target = $region5
    $region4: #{trafo_block.1} parent=1 // pred_region
      _
    $region5: #{trafo_block.1} parent=1 // pred_fallthru
      _
    // Predicated region
    $region6: #{trafo_block.1} parent=1 // pred_check
      _
    $region7: #{trafo_block.1} parent=1 // pred_check_branch
      %24 = sbr.rel (0) target = $region9
    $region8: #{trafo_block.1} parent=1 // pred_region
      _
    $region9: #{trafo_block.1} parent=1 // pred_fallthru
      _
    // Predicated region
    $region10: #{trafo_block.1} parent=1 // pred_check
      _
    $region11: #{trafo_block.1} parent=1 // pred_check_branch
      %26 = sbr.rel (0) target = $region13
    $region12: #{trafo_block.1} parent=1 // pred_region
      _
    $region13: #{trafo_block.1} parent=1 // pred_fallthru
      _
    // Predicated region
    $region14: #{trafo_block.1} parent=1 // pred_check
      _
    $region15: #{trafo_block.1} parent=1 // pred_check_branch
      %28 = sbr.rel (0) target = $region17
    $region16: #{trafo_block.1} parent=1 // pred_region
      _
    $region17: #{trafo_block.1} parent=1 // pred_fallthru
      _
    // Predicated region
    $region18: #{trafo_block.1} parent=1 // pred_check
      _
    $region19: #{trafo_block.1} parent=1 // pred_check_branch
      %30 = sbr.rel (0) target = $region21
    $region20: #{trafo_block.1} parent=1 // pred_region
      _
    $region21: #{trafo_block.1} parent=1 // pred_fallthru
      _
    // Predicated region
    $region22: #{trafo_block.1} parent=1 // pred_check
      _
    $region23: #{trafo_block.1} parent=1 // pred_check_branch
      %32 = sbr.rel (0) target = $region25
    $region24: #{trafo_block.1} parent=1 // pred_region
      _
    $region25: #{trafo_block.1} parent=1 // pred_fallthru
      _
    // Predicated region
    $region26: #{trafo_block.1} parent=1 // pred_check
      _
    $region27: #{trafo_block.1} parent=1 // pred_check_branch
      %34 = sbr.rel (0) target = $region29
    $region28: #{trafo_block.1} parent=1 // pred_region
      _
    $region29: #{trafo_block.1} parent=1 // pred_fallthru
      _
    // Predicated region
    $region30: #{trafo_block.1} parent=1 // pred_check
      _
    $region31: #{trafo_block.1} parent=1 // pred_check_branch
      %36 = sbr.rel (0) target = $region33
    $region32: #{trafo_block.1} parent=1 // pred_region
      _
    $region33: #{trafo_block.1} parent=1 // pred_fallthru
      _
    // Predicated region
    $region34: #{trafo_block.1} parent=1 // pred_check
      _
    $region35: #{trafo_block.1} parent=1 // pred_check_branch
      %38 = sbr.rel (0) target = $region37
    $region36: #{trafo_block.1} parent=1 // pred_region
      _
    $region37: #{trafo_block.1} parent=1 // pred_fallthru
      _
    // Predicated region
    $region38: #{trafo_block.1} parent=1 // pred_check
      _
    $region39: #{trafo_block.1} parent=1 // pred_check_branch
      %40 = sbr.rel (0) target = $region41
    $region40: #{trafo_block.1} parent=1 // pred_region
      _
    $region41: #{trafo_block.1} parent=1 // pred_fallthru
      _
    // Predicated region
    $region42: #{trafo_block.1} parent=1 // pred_check
      _
    $region43: #{trafo_block.1} parent=1 // pred_check_branch
      %42 = sbr.rel (0) target = $region45
    $region44: #{trafo_block.1} parent=1 // pred_region
      _
    $region45: #{trafo_block.1} parent=1 // pred_fallthru
      _
    // Predicated region
    $region46: #{trafo_block.1} parent=1 // pred_check
      _
    $region47: #{trafo_block.1} parent=1 // pred_check_branch
      %44 = sbr.rel (0) target = $region49
    $region48: #{trafo_block.1} parent=1 // pred_region
      _
    $region49: #{trafo_block.1} parent=1 // pred_fallthru
      _
    // Predicated region
    $region50: #{trafo_block.1} parent=1 // pred_check
      _
    $region51: #{trafo_block.1} parent=1 // pred_check_branch
      %46 = sbr.rel (0) target = $region53
    $region52: #{trafo_block.1} parent=1 // pred_region
      _
    $region53: #{trafo_block.1} parent=1 // pred_fallthru
      _
    // Predicated region
    $region54: #{trafo_block.1} parent=1 // pred_check
      _
    $region55: #{trafo_block.1} parent=1 // pred_check_branch
      %48 = sbr.rel (0) target = $region57
    $region56: #{trafo_block.1} parent=1 // pred_region
      _
    $region57: #{trafo_block.1} parent=1 // pred_fallthru
      _
    // Predicated region
    $region58: #{trafo_block.1} parent=1 // pred_check
      _
    $region59: #{trafo_block.1} parent=1 // pred_check_branch
      %50 = sbr.rel (0) target = $region61
    $region60: #{trafo_block.1} parent=1 // pred_region
      _
    $region61: #{trafo_block.1} parent=1 // pred_fallthru
      _
    %v52 = vld [vmem:[%s0] sm:$0xff]
    %v53 = vld [vmem:[%s0 + $0x8] sm:$0xff]
    %vm54 = vcmask 261120
    %v55 = vsel %vm54, %v52, 0.0
    %56 = vadd.xlane.f32.xlu0 %v55
    %v57 = vpop.xlane.xlu0 %56
    %v58 = vsel %vm54, %v53, 0.0
    %59 = vadd.xlane.f32.xlu0 %v58
    %v60 = vpop.xlane.xlu0 %59
    %v61 = vrcp.pop 32.0
    %v62 = vmul.f32 %v57, %v61
    %v63 = vmul.f32 %v60, %v61
    %v64 = vsub.f32 %v52, %v62
    %v65 = vsub.f32 %v53, %v63
    %v66 = vmul.f32 %v64, %v64
    %v67 = vmul.f32 %v65, %v65
    %v68 = vsel %vm54, %v66, 0.0
    %69 = vadd.xlane.f32.xlu0 %v68
    %v70 = vpop.xlane.xlu0 %69
    %v71 = vsel %vm54, %v67, 0.0
    %72 = vadd.xlane.f32.xlu0 %v71
    %v73 = vpop.xlane.xlu0 %72
    %v74 = vmul.f32 %v70, %v61
    %v75 = vmul.f32 %v73, %v61
    %v76 = vadd.f32 %v74, 1e-05
    %v77 = vadd.f32 %v75, 1e-05
    %v78 = vrsqrt.pop %v76
    %v79 = vrsqrt.pop %v77
    %v80 = vmul.f32 %v64, %v78
    %v81 = vmul.f32 %v65, %v79
    %v82 = vld [vmem:[%s7] sm:$0x1]
    %v84 = vlaneseq
    %v85 = vshrl.u32 %v84, 7
    %v86 = vsub.s32 0, %v85
    %v87 = vrot.slane %v82, %v86
    %v89 = vmul.f32 %v80, %v87
    %v90 = vmul.f32 %v81, %v87
    %v91 = vld [vmem:[%s8] sm:$0x1]
    %v93 = vlaneseq
    %v94 = vshrl.u32 %v93, 7
    %v95 = vsub.s32 0, %v94
    %v96 = vrot.slane %v91, %v95
    %v98 = vadd.f32 %v89, %v96
    %v99 = vadd.f32 %v90, %v96
    %v100 = vpack.c.bf16 %v99, %v98
    %v101 = vld [vmem:[%s4] sm:$0xf]
    %v102 = vld [vmem:[%s4 + $0x4] sm:$0xf]
    %v103 = vld [vmem:[%s4 + $0x8] sm:$0xf]
    %v104 = vld [vmem:[%s4 + $0xc] sm:$0xf]
    %v109 = vunpack.c.l.b16 %v101
    %v110 = vunpack.c.l.b16 %v102
    %v111 = vunpack.c.l.b16 %v103
    %v112 = vunpack.c.l.b16 %v104
    %v113 = vpack.c.b16 %v110, %v109
    %v114 = vpack.c.b16 %v112, %v111
    %v118 = vsel %vm54, %v100, 0
    %120 = vmatprep.subr.bf16.mxu0 0
    %121 = vmatpush1.bf16.msra.mxu0 %v113
    %122 = vmatprep.subr.bf16.mxu0 0
    %123 = vmatpush1.bf16.msra.mxu0 %v114
    %124 = vmatprep.subr.bf16.mxu0 0
    %125 = vmatpush1.bf16.msra.mxu0 0
    %126 = vmatprep.subr.bf16.mxu0 0
    %127 = vmatpush1.bf16.msra.mxu0 0
    %128 = vmatprep.subr.bf16.mxu0 0
    %129 = vmatpush1.bf16.msra.mxu0 0
    %130 = vmatprep.subr.bf16.mxu0 0
    %131 = vmatpush1.bf16.msra.mxu0 0
    %132 = vmatprep.subr.bf16.mxu0 0
    %133 = vmatpush1.bf16.msra.mxu0 0
    %134 = vmatprep.subr.bf16.mxu0 0
    %135 = vmatpush1.bf16.msra.mxu0 0
    %136 = vmatprep.subr.bf16.mxu0 0
    %137 = vmatpush1.bf16.msra.mxu0 0
    %138 = vmatprep.subr.bf16.mxu0 0
    %139 = vmatpush1.bf16.msra.mxu0 0
    %140 = vmatprep.subr.bf16.mxu0 0
    %141 = vmatpush1.bf16.msra.mxu0 0
    %142 = vmatprep.subr.bf16.mxu0 0
    %143 = vmatpush1.bf16.msra.mxu0 0
    %144 = vmatprep.subr.bf16.mxu0 0
    %145 = vmatpush1.bf16.msra.mxu0 0
    %146 = vmatprep.subr.bf16.mxu0 0
    %147 = vmatpush1.bf16.msra.mxu0 0
    %148 = vmatprep.subr.bf16.mxu0 0
    %149 = vmatpush1.bf16.msra.mxu0 0
    %150 = vmatprep.subr.bf16.mxu0 0
    %151 = vmatpush1.bf16.msra.mxu0 0
    %152 = vmatprep.mubr.bf16.mxu0 0
    %153 = vmatmul.mubr.bf16.gmra.mrb[0].mxu0 %v118
    %v154 = vpop.f32.mrb[0].mxu0
    %v155 = vadd.f32 0.0, %v154
    %v156 = vpop.f32.mrb[0].mxu0
    %v157 = vpop.f32.mrb[0].mxu0
    %v158 = vadd.f32 0.0, %v157
    %v159 = vpop.f32.mrb[0].mxu0
    %160 = vdwg.mxu0
    %v161 = vld [vmem:[%s2] sm:$0x1]
    %v162 = vld [vmem:[%s2 + $0x1] sm:$0x1]
    %v163 = vld [vmem:[%s2 + $0x2] sm:$0x1]
    %v164 = vld [vmem:[%s2 + $0x3] sm:$0x1]
    %v169 = vlaneseq
    %v170 = vshrl.u32 %v169, 7
    %v171 = vsub.s32 0, %v170
    %v172 = vrot.slane %v161, %v171
    %v173 = vlaneseq
    %v174 = vshrl.u32 %v173, 7
    %v175 = vsub.s32 0, %v174
    %v176 = vrot.slane %v162, %v175
    %v177 = vlaneseq
    %v178 = vshrl.u32 %v177, 7
    %v179 = vsub.s32 0, %v178
    %v180 = vrot.slane %v163, %v179
    %v181 = vlaneseq
    %v182 = vshrl.u32 %v181, 7
    %v183 = vsub.s32 0, %v182
    %v184 = vrot.slane %v164, %v183
    %v189 = vmul.f32 %v98, %v172
    %v190 = vmul.f32 %v99, %v172
    %v191 = vmul.f32 %v98, %v176
    %v192 = vmul.f32 %v99, %v176
    %v193 = vmul.f32 %v98, %v180
    %v194 = vmul.f32 %v99, %v180
    %v195 = vmul.f32 %v98, %v184
    %v196 = vmul.f32 %v99, %v184
    %v197 = vpack.c.bf16 %v190, %v189
    %v198 = vpack.c.bf16 %v192, %v191
    %v199 = vpack.c.bf16 %v194, %v193
    %v200 = vpack.c.bf16 %v196, %v195
    %v202 = vsel %vm54, %v197, 0
    %v205 = vsel %vm54, %v198, 0
    %v208 = vsel %vm54, %v199, 0
    %v211 = vsel %vm54, %v200, 0
    %213 = vmatprep.subr.bf16.mxu0 0
    %214 = vmatpush1.bf16.xpose.msra.mxu0 %v118
    %215 = vmatprep.subr.bf16.mxu0 0
    %216 = vmatpush1.bf16.xpose.msra.mxu0 0
    %217 = vmatprep.subr.bf16.mxu0 0
    %218 = vmatpush1.bf16.xpose.msra.mxu0 0
    %219 = vmatprep.subr.bf16.mxu0 0
    %220 = vmatpush1.bf16.xpose.msra.mxu0 0
    %221 = vmatprep.subr.bf16.mxu0 0
    %222 = vmatpush1.bf16.xpose.msra.mxu0 0
    %223 = vmatprep.subr.bf16.mxu0 0
    %224 = vmatpush1.bf16.xpose.msra.mxu0 0
    %225 = vmatprep.subr.bf16.mxu0 0
    %226 = vmatpush1.bf16.xpose.msra.mxu0 0
    %227 = vmatprep.subr.bf16.mxu0 0
    %228 = vmatpush1.bf16.xpose.msra.mxu0 0
    %229 = vmatprep.subr.bf16.mxu0 0
    %230 = vmatpush1.bf16.xpose.msra.mxu0 0
    %231 = vmatprep.subr.bf16.mxu0 0
    %232 = vmatpush1.bf16.xpose.msra.mxu0 0
    %233 = vmatprep.subr.bf16.mxu0 0
    %234 = vmatpush1.bf16.xpose.msra.mxu0 0
    %235 = vmatprep.subr.bf16.mxu0 0
    %236 = vmatpush1.bf16.xpose.msra.mxu0 0
    %237 = vmatprep.subr.bf16.mxu0 0
    %238 = vmatpush1.bf16.xpose.msra.mxu0 0
    %239 = vmatprep.subr.bf16.mxu0 0
    %240 = vmatpush1.bf16.xpose.msra.mxu0 0
    %241 = vmatprep.subr.bf16.mxu0 0
    %242 = vmatpush1.bf16.xpose.msra.mxu0 0
    %243 = vmatprep.subr.bf16.mxu0 0
    %244 = vmatpush1.bf16.xpose.msra.mxu0 0
    %245 = vmatprep.mubr.bf16.mxu0 0
    %246 = vmatmul.mubr.bf16.gmra.mrb[0].mxu0 %v202
    %v247 = vpop.f32.mrb[0].mxu0
    %v248 = vadd.f32 0.0, %v247
    %v249 = vpop.f32.mrb[0].mxu0
    %v250 = vpop.f32.mrb[0].mxu0
    %v251 = vadd.f32 0.0, %v250
    %v252 = vpop.f32.mrb[0].mxu0
    %253 = vmatprep.mubr.bf16.mxu0 0
    %254 = vmatmul.mubr.bf16.gmra.mrb[0].mxu0 %v205
    %v255 = vpop.f32.mrb[0].mxu0
    %v256 = vadd.f32 0.0, %v255
    %v257 = vpop.f32.mrb[0].mxu0
    %v258 = vpop.f32.mrb[0].mxu0
    %v259 = vadd.f32 0.0, %v258
    %v260 = vpop.f32.mrb[0].mxu0
    %261 = vmatprep.mubr.bf16.mxu0 0
    %262 = vmatmul.mubr.bf16.gmra.mrb[0].mxu0 %v208
    %v263 = vpop.f32.mrb[0].mxu0
    %v264 = vadd.f32 0.0, %v263
    %v265 = vpop.f32.mrb[0].mxu0
    %v266 = vpop.f32.mrb[0].mxu0
    %v267 = vadd.f32 0.0, %v266
    %v268 = vpop.f32.mrb[0].mxu0
    %269 = vmatprep.mubr.bf16.mxu0 0
    %270 = vmatmul.mubr.bf16.gmra.mrb[0].mxu0 %v211
    %v271 = vpop.f32.mrb[0].mxu0
    %v272 = vadd.f32 0.0, %v271
    %v273 = vpop.f32.mrb[0].mxu0
    %v274 = vpop.f32.mrb[0].mxu0
    %v275 = vadd.f32 0.0, %v274
    %v276 = vpop.f32.mrb[0].mxu0
    %277 = vdwg.mxu0
    %v278 = vld [vmem:[%s1] sm:$0xff]
    %v279 = vld [vmem:[%s1 + $0x8] sm:$0xff]
    %v280 = vadd.f32 %v248, %v278
    %v281 = vadd.f32 %v251, %v279
    %v282 = vadd.f32 %v256, %v278
    %v283 = vadd.f32 %v259, %v279
    %v284 = vadd.f32 %v264, %v278
    %v285 = vadd.f32 %v267, %v279
    %v286 = vadd.f32 %v272, %v278
    %v287 = vadd.f32 %v275, %v279
    %vm288 = vcmask 130048
    %v289 = vsel %vm288, %v280, -inf
    %290 = vmax.xlane.f32.xlu0 %v289
    %v291 = vpop.xlane.xlu0 %290
    %v292 = vsel %vm288, %v281, -inf
    %293 = vmax.xlane.f32.xlu0 %v292
    %v294 = vpop.xlane.xlu0 %293
    %v295 = vsel %vm288, %v282, -inf
    %296 = vmax.xlane.f32.xlu0 %v295
    %v297 = vpop.xlane.xlu0 %296
    %v298 = vsel %vm288, %v283, -inf
    %299 = vmax.xlane.f32.xlu0 %v298
    %v300 = vpop.xlane.xlu0 %299
    %v301 = vsel %vm288, %v284, -inf
    %302 = vmax.xlane.f32.xlu0 %v301
    %v303 = vpop.xlane.xlu0 %302
    %v304 = vsel %vm288, %v285, -inf
    %305 = vmax.xlane.f32.xlu0 %v304
    %v306 = vpop.xlane.xlu0 %305
    %v307 = vsel %vm288, %v286, -inf
    %308 = vmax.xlane.f32.xlu0 %v307
    %v309 = vpop.xlane.xlu0 %308
    %v310 = vsel %vm288, %v287, -inf
    %311 = vmax.xlane.f32.xlu0 %v310
    %v312 = vpop.xlane.xlu0 %311
    %v313 = vsub.f32 %v280, %v291
    %v314 = vsub.f32 %v281, %v294
    %v315 = vsub.f32 %v282, %v297
    %v316 = vsub.f32 %v283, %v300
    %v317 = vsub.f32 %v284, %v303
    %v318 = vsub.f32 %v285, %v306
    %v319 = vsub.f32 %v286, %v309
    %v320 = vsub.f32 %v287, %v312
    %v321 = vmul.f32 %v313, 1.442695
    %v322 = vpow.pop %v321
    %v323 = vmul.f32 %v314, 1.442695
    %v324 = vpow.pop %v323
    %v325 = vmul.f32 %v315, 1.442695
    %v326 = vpow.pop %v325
    %v327 = vmul.f32 %v316, 1.442695
    %v328 = vpow.pop %v327
    %v329 = vmul.f32 %v317, 1.442695
    %v330 = vpow.pop %v329
    %v331 = vmul.f32 %v318, 1.442695
    %v332 = vpow.pop %v331
    %v333 = vmul.f32 %v319, 1.442695
    %v334 = vpow.pop %v333
    %v335 = vmul.f32 %v320, 1.442695
    %v336 = vpow.pop %v335
    %v337 = vsel %vm288, %v322, 0.0
    %338 = vadd.xlane.f32.xlu0 %v337
    %v339 = vpop.xlane.xlu0 %338
    %v340 = vsel %vm288, %v324, 0.0
    %341 = vadd.xlane.f32.xlu0 %v340
    %v342 = vpop.xlane.xlu0 %341
    %v343 = vsel %vm288, %v326, 0.0
    %344 = vadd.xlane.f32.xlu0 %v343
    %v345 = vpop.xlane.xlu0 %344
    %v346 = vsel %vm288, %v328, 0.0
    %347 = vadd.xlane.f32.xlu0 %v346
    %v348 = vpop.xlane.xlu0 %347
    %v349 = vsel %vm288, %v330, 0.0
    %350 = vadd.xlane.f32.xlu0 %v349
    %v351 = vpop.xlane.xlu0 %350
    %v352 = vsel %vm288, %v332, 0.0
    %353 = vadd.xlane.f32.xlu0 %v352
    %v354 = vpop.xlane.xlu0 %353
    %v355 = vsel %vm288, %v334, 0.0
    %356 = vadd.xlane.f32.xlu0 %v355
    %v357 = vpop.xlane.xlu0 %356
    %v358 = vsel %vm288, %v336, 0.0
    %359 = vadd.xlane.f32.xlu0 %v358
    %v360 = vpop.xlane.xlu0 %359
    %v361 = vrcp.pop %v339
    %v362 = vrcp.pop %v342
    %v363 = vrcp.pop %v345
    %v364 = vrcp.pop %v348
    %v365 = vrcp.pop %v351
    %v366 = vrcp.pop %v354
    %v367 = vrcp.pop %v357
    %v368 = vrcp.pop %v360
    %v369 = vmul.f32 %v322, %v361
    %v370 = vmul.f32 %v324, %v362
    %v371 = vmul.f32 %v326, %v363
    %v372 = vmul.f32 %v328, %v364
    %v373 = vmul.f32 %v330, %v365
    %v374 = vmul.f32 %v332, %v366
    %v375 = vmul.f32 %v334, %v367
    %v376 = vmul.f32 %v336, %v368
    %v377 = vld [vmem:[%s3] sm:$0x1]
    %v378 = vld [vmem:[%s3 + $0x1] sm:$0x1]
    %v379 = vld [vmem:[%s3 + $0x2] sm:$0x1]
    %v380 = vld [vmem:[%s3 + $0x3] sm:$0x1]
    %v385 = vlaneseq
    %v386 = vshrl.u32 %v385, 7
    %v387 = vsub.s32 0, %v386
    %v388 = vrot.slane %v377, %v387
    %v389 = vlaneseq
    %v390 = vshrl.u32 %v389, 7
    %v391 = vsub.s32 0, %v390
    %v392 = vrot.slane %v378, %v391
    %v393 = vlaneseq
    %v394 = vshrl.u32 %v393, 7
    %v395 = vsub.s32 0, %v394
    %v396 = vrot.slane %v379, %v395
    %v397 = vlaneseq
    %v398 = vshrl.u32 %v397, 7
    %v399 = vsub.s32 0, %v398
    %v400 = vrot.slane %v380, %v399
    %v405 = vmul.f32 %v155, %v388
    %v406 = vmul.f32 %v158, %v388
    %v407 = vmul.f32 %v155, %v392
    %v408 = vmul.f32 %v158, %v392
    %v409 = vmul.f32 %v155, %v396
    %v410 = vmul.f32 %v158, %v396
    %v411 = vmul.f32 %v155, %v400
    %v412 = vmul.f32 %v158, %v400
    %v413 = vpack.c.bf16 %v406, %v405
    %v414 = vpack.c.bf16 %v408, %v407
    %v415 = vpack.c.bf16 %v410, %v409
    %v416 = vpack.c.bf16 %v412, %v411
    %v417 = vpack.c.bf16 %v370, %v369
    %v418 = vpack.c.bf16 %v372, %v371
    %v419 = vpack.c.bf16 %v374, %v373
    %v420 = vpack.c.bf16 %v376, %v375
    %v422 = vsel %vm288, %v417, 0
    %424 = vmatprep.subr.bf16.mxu0 0
    %425 = vmatpush1.bf16.msra.mxu0 %v413
    %426 = vmatprep.subr.bf16.mxu0 0
    %427 = vmatpush1.bf16.msra.mxu0 0
    %428 = vmatprep.subr.bf16.mxu0 0
    %429 = vmatpush1.bf16.msra.mxu0 0
    %430 = vmatprep.subr.bf16.mxu0 0
    %431 = vmatpush1.bf16.msra.mxu0 0
    %432 = vmatprep.subr.bf16.mxu0 0
    %433 = vmatpush1.bf16.msra.mxu0 0
    %434 = vmatprep.subr.bf16.mxu0 0
    %435 = vmatpush1.bf16.msra.mxu0 0
    %436 = vmatprep.subr.bf16.mxu0 0
    %437 = vmatpush1.bf16.msra.mxu0 0
    %438 = vmatprep.subr.bf16.mxu0 0
    %439 = vmatpush1.bf16.msra.mxu0 0
    %440 = vmatprep.subr.bf16.mxu0 0
    %441 = vmatpush1.bf16.msra.mxu0 0
    %442 = vmatprep.subr.bf16.mxu0 0
    %443 = vmatpush1.bf16.msra.mxu0 0
    %444 = vmatprep.subr.bf16.mxu0 0
    %445 = vmatpush1.bf16.msra.mxu0 0
    %446 = vmatprep.subr.bf16.mxu0 0
    %447 = vmatpush1.bf16.msra.mxu0 0
    %448 = vmatprep.subr.bf16.mxu0 0
    %449 = vmatpush1.bf16.msra.mxu0 0
    %450 = vmatprep.subr.bf16.mxu0 0
    %451 = vmatpush1.bf16.msra.mxu0 0
    %452 = vmatprep.subr.bf16.mxu0 0
    %453 = vmatpush1.bf16.msra.mxu0 0
    %454 = vmatprep.subr.bf16.mxu0 0
    %455 = vmatpush1.bf16.msra.mxu0 0
    %456 = vmatprep.mubr.bf16.mxu0 0
    %457 = vmatmul.mubr.bf16.gmra.mrb[0].mxu0 %v422
    %v458 = vpop.f32.mrb[0].mxu0
    %v459 = vadd.f32 0.0, %v458
    %v460 = vpop.f32.mrb[0].mxu0
    %v461 = vpop.f32.mrb[0].mxu0
    %v462 = vadd.f32 0.0, %v461
    %v463 = vpop.f32.mrb[0].mxu0
    %464 = vdwg.mxu0
    %v466 = vsel %vm288, %v418, 0
    %468 = vmatprep.subr.bf16.mxu0 0
    %469 = vmatpush1.bf16.msra.mxu0 %v414
    %470 = vmatprep.subr.bf16.mxu0 0
    %471 = vmatpush1.bf16.msra.mxu0 0
    %472 = vmatprep.subr.bf16.mxu0 0
    %473 = vmatpush1.bf16.msra.mxu0 0
    %474 = vmatprep.subr.bf16.mxu0 0
    %475 = vmatpush1.bf16.msra.mxu0 0
    %476 = vmatprep.subr.bf16.mxu0 0
    %477 = vmatpush1.bf16.msra.mxu0 0
    %478 = vmatprep.subr.bf16.mxu0 0
    %479 = vmatpush1.bf16.msra.mxu0 0
    %480 = vmatprep.subr.bf16.mxu0 0
    %481 = vmatpush1.bf16.msra.mxu0 0
    %482 = vmatprep.subr.bf16.mxu0 0
    %483 = vmatpush1.bf16.msra.mxu0 0
    %484 = vmatprep.subr.bf16.mxu0 0
    %485 = vmatpush1.bf16.msra.mxu0 0
    %486 = vmatprep.subr.bf16.mxu0 0
    %487 = vmatpush1.bf16.msra.mxu0 0
    %488 = vmatprep.subr.bf16.mxu0 0
    %489 = vmatpush1.bf16.msra.mxu0 0
    %490 = vmatprep.subr.bf16.mxu0 0
    %491 = vmatpush1.bf16.msra.mxu0 0
    %492 = vmatprep.subr.bf16.mxu0 0
    %493 = vmatpush1.bf16.msra.mxu0 0
    %494 = vmatprep.subr.bf16.mxu0 0
    %495 = vmatpush1.bf16.msra.mxu0 0
    %496 = vmatprep.subr.bf16.mxu0 0
    %497 = vmatpush1.bf16.msra.mxu0 0
    %498 = vmatprep.subr.bf16.mxu0 0
    %499 = vmatpush1.bf16.msra.mxu0 0
    %500 = vmatprep.mubr.bf16.mxu0 0
    %501 = vmatmul.mubr.bf16.gmra.mrb[0].mxu0 %v466
    %v502 = vpop.f32.mrb[0].mxu0
    %v503 = vadd.f32 0.0, %v502
    %v504 = vpop.f32.mrb[0].mxu0
    %v505 = vpop.f32.mrb[0].mxu0
    %v506 = vadd.f32 0.0, %v505
    %v507 = vpop.f32.mrb[0].mxu0
    %508 = vdwg.mxu0
    %v510 = vsel %vm288, %v419, 0
    %512 = vmatprep.subr.bf16.mxu0 0
    %513 = vmatpush1.bf16.msra.mxu0 %v415
    %514 = vmatprep.subr.bf16.mxu0 0
    %515 = vmatpush1.bf16.msra.mxu0 0
    %516 = vmatprep.subr.bf16.mxu0 0
    %517 = vmatpush1.bf16.msra.mxu0 0
    %518 = vmatprep.subr.bf16.mxu0 0
    %519 = vmatpush1.bf16.msra.mxu0 0
    %520 = vmatprep.subr.bf16.mxu0 0
    %521 = vmatpush1.bf16.msra.mxu0 0
    %522 = vmatprep.subr.bf16.mxu0 0
    %523 = vmatpush1.bf16.msra.mxu0 0
    %524 = vmatprep.subr.bf16.mxu0 0
    %525 = vmatpush1.bf16.msra.mxu0 0
    %526 = vmatprep.subr.bf16.mxu0 0
    %527 = vmatpush1.bf16.msra.mxu0 0
    %528 = vmatprep.subr.bf16.mxu0 0
    %529 = vmatpush1.bf16.msra.mxu0 0
    %530 = vmatprep.subr.bf16.mxu0 0
    %531 = vmatpush1.bf16.msra.mxu0 0
    %532 = vmatprep.subr.bf16.mxu0 0
    %533 = vmatpush1.bf16.msra.mxu0 0
    %534 = vmatprep.subr.bf16.mxu0 0
    %535 = vmatpush1.bf16.msra.mxu0 0
    %536 = vmatprep.subr.bf16.mxu0 0
    %537 = vmatpush1.bf16.msra.mxu0 0
    %538 = vmatprep.subr.bf16.mxu0 0
    %539 = vmatpush1.bf16.msra.mxu0 0
    %540 = vmatprep.subr.bf16.mxu0 0
    %541 = vmatpush1.bf16.msra.mxu0 0
    %542 = vmatprep.subr.bf16.mxu0 0
    %543 = vmatpush1.bf16.msra.mxu0 0
    %544 = vmatprep.mubr.bf16.mxu0 0
    %545 = vmatmul.mubr.bf16.gmra.mrb[0].mxu0 %v510
    %v546 = vpop.f32.mrb[0].mxu0
    %v547 = vadd.f32 0.0, %v546
    %v548 = vpop.f32.mrb[0].mxu0
    %v549 = vpop.f32.mrb[0].mxu0
    %v550 = vadd.f32 0.0, %v549
    %v551 = vpop.f32.mrb[0].mxu0
    %552 = vdwg.mxu0
    %v554 = vsel %vm288, %v420, 0
    %556 = vmatprep.subr.bf16.mxu0 0
    %557 = vmatpush1.bf16.msra.mxu0 %v416
    %558 = vmatprep.subr.bf16.mxu0 0
    %559 = vmatpush1.bf16.msra.mxu0 0
    %560 = vmatprep.subr.bf16.mxu0 0
    %561 = vmatpush1.bf16.msra.mxu0 0
    %562 = vmatprep.subr.bf16.mxu0 0
    %563 = vmatpush1.bf16.msra.mxu0 0
    %564 = vmatprep.subr.bf16.mxu0 0
    %565 = vmatpush1.bf16.msra.mxu0 0
    %566 = vmatprep.subr.bf16.mxu0 0
    %567 = vmatpush1.bf16.msra.mxu0 0
    %568 = vmatprep.subr.bf16.mxu0 0
    %569 = vmatpush1.bf16.msra.mxu0 0
    %570 = vmatprep.subr.bf16.mxu0 0
    %571 = vmatpush1.bf16.msra.mxu0 0
    %572 = vmatprep.subr.bf16.mxu0 0
    %573 = vmatpush1.bf16.msra.mxu0 0
    %574 = vmatprep.subr.bf16.mxu0 0
    %575 = vmatpush1.bf16.msra.mxu0 0
    %576 = vmatprep.subr.bf16.mxu0 0
    %577 = vmatpush1.bf16.msra.mxu0 0
    %578 = vmatprep.subr.bf16.mxu0 0
    %579 = vmatpush1.bf16.msra.mxu0 0
    %580 = vmatprep.subr.bf16.mxu0 0
    %581 = vmatpush1.bf16.msra.mxu0 0
    %582 = vmatprep.subr.bf16.mxu0 0
    %583 = vmatpush1.bf16.msra.mxu0 0
    %584 = vmatprep.subr.bf16.mxu0 0
    %585 = vmatpush1.bf16.msra.mxu0 0
    %586 = vmatprep.subr.bf16.mxu0 0
    %587 = vmatpush1.bf16.msra.mxu0 0
    %588 = vmatprep.mubr.bf16.mxu0 0
    %589 = vmatmul.mubr.bf16.gmra.mrb[0].mxu0 %v554
    %v590 = vpop.f32.mrb[0].mxu0
    %v591 = vadd.f32 0.0, %v590
    %v592 = vpop.f32.mrb[0].mxu0
    %v593 = vpop.f32.mrb[0].mxu0
    %v594 = vadd.f32 0.0, %v593
    %v595 = vpop.f32.mrb[0].mxu0
    %596 = vdwg.mxu0
    %v597 = vsel %vm54, %v459, 0.0
    %v598 = vsel %vm54, %v503, 0.0
    %v599 = vadd.f32 %v597, %v598
    %v600 = vsel %vm54, %v547, 0.0
    %v601 = vadd.f32 %v599, %v600
    %v602 = vsel %vm54, %v591, 0.0
    %v603 = vadd.f32 %v601, %v602
    %v604 = vsel %vm54, %v462, 0.0
    %v605 = vsel %vm54, %v506, 0.0
    %v606 = vadd.f32 %v604, %v605
    %v607 = vsel %vm54, %v550, 0.0
    %v608 = vadd.f32 %v606, %v607
    %v609 = vsel %vm54, %v594, 0.0
    %v610 = vadd.f32 %v608, %v609
    %v611 = vpack.c.bf16 %v610, %v603
    %v612 = vld [vmem:[%s5] sm:$0xf]
    %v613 = vld [vmem:[%s5 + $0x4] sm:$0xf]
    %v614 = vld [vmem:[%s5 + $0x8] sm:$0xf]
    %v615 = vld [vmem:[%s5 + $0xc] sm:$0xf]
    %v616 = vld [vmem:[%s6] sm:$0x1]
    %v618 = vlaneseq
    %v619 = vshrl.u32 %v618, 7
    %v620 = vsub.s32 0, %v619
    %v621 = vrot.slane %v616, %v620
    %v627 = vunpack.c.l.b16 %v612
    %v628 = vunpack.c.l.b16 %v613
    %v629 = vunpack.c.l.b16 %v614
    %v630 = vunpack.c.l.b16 %v615
    %v631 = vpack.c.b16 %v628, %v627
    %v632 = vpack.c.b16 %v630, %v629
    %v636 = vsel %vm54, %v611, 0
    %638 = vmatprep.subr.bf16.mxu0 0
    %639 = vmatpush1.bf16.msra.mxu0 %v631
    %640 = vmatprep.subr.bf16.mxu0 0
    %641 = vmatpush1.bf16.msra.mxu0 %v632
    %642 = vmatprep.subr.bf16.mxu0 0
    %643 = vmatpush1.bf16.msra.mxu0 0
    %644 = vmatprep.subr.bf16.mxu0 0
    %645 = vmatpush1.bf16.msra.mxu0 0
    %646 = vmatprep.subr.bf16.mxu0 0
    %647 = vmatpush1.bf16.msra.mxu0 0
    %648 = vmatprep.subr.bf16.mxu0 0
    %649 = vmatpush1.bf16.msra.mxu0 0
    %650 = vmatprep.subr.bf16.mxu0 0
    %651 = vmatpush1.bf16.msra.mxu0 0
    %652 = vmatprep.subr.bf16.mxu0 0
    %653 = vmatpush1.bf16.msra.mxu0 0
    %654 = vmatprep.subr.bf16.mxu0 0
    %655 = vmatpush1.bf16.msra.mxu0 0
    %656 = vmatprep.subr.bf16.mxu0 0
    %657 = vmatpush1.bf16.msra.mxu0 0
    %658 = vmatprep.subr.bf16.mxu0 0
    %659 = vmatpush1.bf16.msra.mxu0 0
    %660 = vmatprep.subr.bf16.mxu0 0
    %661 = vmatpush1.bf16.msra.mxu0 0
    %662 = vmatprep.subr.bf16.mxu0 0
    %663 = vmatpush1.bf16.msra.mxu0 0
    %664 = vmatprep.subr.bf16.mxu0 0
    %665 = vmatpush1.bf16.msra.mxu0 0
    %666 = vmatprep.subr.bf16.mxu0 0
    %667 = vmatpush1.bf16.msra.mxu0 0
    %668 = vmatprep.subr.bf16.mxu0 0
    %669 = vmatpush1.bf16.msra.mxu0 0
    %670 = vmatprep.mubr.bf16.mxu0 0
    %671 = vmatmul.mubr.bf16.gmra.mrb[0].mxu0 %v636
    %v672 = vpop.f32.mrb[0].mxu0
    %v673 = vadd.f32 %v621, %v672
    %v674 = vpop.f32.mrb[0].mxu0
    %v675 = vpop.f32.mrb[0].mxu0
    %v676 = vadd.f32 %v621, %v675
    %v677 = vpop.f32.mrb[0].mxu0
    %678 = vdwg.mxu0
    %v679 = vsel %vm54, %v673, 0.0
    %680 = vadd.xlane.f32.xlu0 %v679
    %v681 = vpop.xlane.xlu0 %680
    %v682 = vsel %vm54, %v676, 0.0
    %683 = vadd.xlane.f32.xlu0 %v682
    %v684 = vpop.xlane.xlu0 %683
    %v685 = vmul.f32 %v681, %v61
    %v686 = vmul.f32 %v684, %v61
    %v687 = vsub.f32 %v673, %v685
    %v688 = vsub.f32 %v676, %v686
    %v689 = vmul.f32 %v687, %v687
    %v690 = vmul.f32 %v688, %v688
    %v691 = vsel %vm54, %v689, 0.0
    %692 = vadd.xlane.f32.xlu0 %v691
    %v693 = vpop.xlane.xlu0 %692
    %v694 = vsel %vm54, %v690, 0.0
    %695 = vadd.xlane.f32.xlu0 %v694
    %v696 = vpop.xlane.xlu0 %695
    %v697 = vmul.f32 %v693, %v61
    %v698 = vmul.f32 %v696, %v61
    %v699 = vadd.f32 %v697, 1e-05
    %v700 = vadd.f32 %v698, 1e-05
    %v701 = vrsqrt.pop %v699
    %v702 = vrsqrt.pop %v700
    %v703 = vmul.f32 %v687, %v701
    %v704 = vmul.f32 %v688, %v702
    %v705 = vld [vmem:[%s9] sm:$0x1]
    %v707 = vlaneseq
    %v708 = vshrl.u32 %v707, 7
    %v709 = vsub.s32 0, %v708
    %v710 = vrot.slane %v705, %v709
    %v712 = vmul.f32 %v703, %v710
    %v713 = vmul.f32 %v704, %v710
    %v714 = vld [vmem:[%s10] sm:$0x1]
    %v716 = vlaneseq
    %v717 = vshrl.u32 %v716, 7
    %v718 = vsub.s32 0, %v717
    %v719 = vrot.slane %v714, %v718
    %v721 = vadd.f32 %v712, %v719
    %v722 = vadd.f32 %v713, %v719
    %v723 = vpack.c.bf16 %v722, %v721
    %v724 = vld [vmem:[%s11] sm:$0xf]
    %v725 = vld [vmem:[%s11 + $0x4] sm:$0xf]
    %v726 = vld [vmem:[%s11 + $0x8] sm:$0xf]
    %v727 = vld [vmem:[%s11 + $0xc] sm:$0xf]
    %v728 = vld [vmem:[%s12] sm:$0x1]
    %v730 = vlaneseq
    %v731 = vshrl.u32 %v730, 7
    %v732 = vsub.s32 0, %v731
    %v733 = vrot.slane %v728, %v732
    %v739 = vunpack.c.l.b16 %v724
    %v740 = vunpack.c.l.b16 %v725
    %v741 = vunpack.c.l.b16 %v726
    %v742 = vunpack.c.l.b16 %v727
    %v743 = vpack.c.b16 %v740, %v739
    %v744 = vpack.c.b16 %v742, %v741
    %v748 = vsel %vm54, %v723, 0
    %750 = vmatprep.subr.bf16.mxu0 0
    %751 = vmatpush1.bf16.msra.mxu0 %v743
    %752 = vmatprep.subr.bf16.mxu0 0
    %753 = vmatpush1.bf16.msra.mxu0 %v744
    %754 = vmatprep.subr.bf16.mxu0 0
    %755 = vmatpush1.bf16.msra.mxu0 0
    %756 = vmatprep.subr.bf16.mxu0 0
    %757 = vmatpush1.bf16.msra.mxu0 0
    %758 = vmatprep.subr.bf16.mxu0 0
    %759 = vmatpush1.bf16.msra.mxu0 0
    %760 = vmatprep.subr.bf16.mxu0 0
    %761 = vmatpush1.bf16.msra.mxu0 0
    %762 = vmatprep.subr.bf16.mxu0 0
    %763 = vmatpush1.bf16.msra.mxu0 0
    %764 = vmatprep.subr.bf16.mxu0 0
    %765 = vmatpush1.bf16.msra.mxu0 0
    %766 = vmatprep.subr.bf16.mxu0 0
    %767 = vmatpush1.bf16.msra.mxu0 0
    %768 = vmatprep.subr.bf16.mxu0 0
    %769 = vmatpush1.bf16.msra.mxu0 0
    %770 = vmatprep.subr.bf16.mxu0 0
    %771 = vmatpush1.bf16.msra.mxu0 0
    %772 = vmatprep.subr.bf16.mxu0 0
    %773 = vmatpush1.bf16.msra.mxu0 0
    %774 = vmatprep.subr.bf16.mxu0 0
    %775 = vmatpush1.bf16.msra.mxu0 0
    %776 = vmatprep.subr.bf16.mxu0 0
    %777 = vmatpush1.bf16.msra.mxu0 0
    %778 = vmatprep.subr.bf16.mxu0 0
    %779 = vmatpush1.bf16.msra.mxu0 0
    %780 = vmatprep.subr.bf16.mxu0 0
    %781 = vmatpush1.bf16.msra.mxu0 0
    %782 = vmatprep.mubr.bf16.mxu0 0
    %783 = vmatmul.mubr.bf16.gmra.mrb[0].mxu0 %v748
    %v784 = vpop.f32.mrb[0].mxu0
    %v785 = vadd.f32 %v733, %v784
    %v786 = vpop.f32.mrb[0].mxu0
    %v787 = vpop.f32.mrb[0].mxu0
    %v788 = vadd.f32 %v733, %v787
    %v789 = vpop.f32.mrb[0].mxu0
    %790 = vdwg.mxu0
    %v791 = vmul.f32 %v785, 0.5
    %v792 = vmul.f32 %v788, 0.5
    %v793 = vmul.f32 %v785, %v785
    %v794 = vmul.f32 %v788, %v788
    %v795 = vmul.f32 %v793, %v785
    %v796 = vmul.f32 %v794, %v788
    %v797 = vmul.f32 %v795, 0.044715
    %v798 = vmul.f32 %v796, 0.044715
    %v799 = vadd.f32 %v785, %v797
    %v800 = vadd.f32 %v788, %v798
    %v801 = vmul.f32 %v799, 0.7978846
    %v802 = vmul.f32 %v800, 0.7978846
    %v803 = vtanh.pop %v801
    %v804 = vtanh.pop %v802
    %v805 = vadd.f32 %v803, 1.0
    %v806 = vadd.f32 %v804, 1.0
    %v807 = vmul.f32 %v791, %v805
    %v808 = vmul.f32 %v792, %v806
    %v809 = vpack.c.bf16 %v808, %v807
    %v810 = vld [vmem:[%s13] sm:$0xf]
    %v811 = vld [vmem:[%s13 + $0x4] sm:$0xf]
    %v812 = vld [vmem:[%s13 + $0x8] sm:$0xf]
    %v813 = vld [vmem:[%s13 + $0xc] sm:$0xf]
    %v814 = vld [vmem:[%s13 + $0x10] sm:$0xf]
    %v815 = vld [vmem:[%s13 + $0x14] sm:$0xf]
    %v816 = vld [vmem:[%s13 + $0x18] sm:$0xf]
    %v817 = vld [vmem:[%s13 + $0x1c] sm:$0xf]
    %v818 = vld [vmem:[%s13 + $0x20] sm:$0xf]
    %v819 = vld [vmem:[%s13 + $0x24] sm:$0xf]
    %v820 = vld [vmem:[%s13 + $0x28] sm:$0xf]
    %v821 = vld [vmem:[%s13 + $0x2c] sm:$0xf]
    %v822 = vld [vmem:[%s13 + $0x30] sm:$0xf]
    %v823 = vld [vmem:[%s13 + $0x34] sm:$0xf]
    %v824 = vld [vmem:[%s13 + $0x38] sm:$0xf]
    %v825 = vld [vmem:[%s13 + $0x3c] sm:$0xf]
    %v826 = vld [vmem:[%s14] sm:$0x1]
    %v828 = vlaneseq
    %v829 = vshrl.u32 %v828, 7
    %v830 = vsub.s32 0, %v829
    %v831 = vrot.slane %v826, %v830
    %v849 = vunpack.c.l.b16 %v810
    %v850 = vunpack.c.l.b16 %v811
    %v851 = vunpack.c.l.b16 %v812
    %v852 = vunpack.c.l.b16 %v813
    %v853 = vunpack.c.l.b16 %v814
    %v854 = vunpack.c.l.b16 %v815
    %v855 = vunpack.c.l.b16 %v816
    %v856 = vunpack.c.l.b16 %v817
    %v857 = vunpack.c.l.b16 %v818
    %v858 = vunpack.c.l.b16 %v819
    %v859 = vunpack.c.l.b16 %v820
    %v860 = vunpack.c.l.b16 %v821
    %v861 = vunpack.c.l.b16 %v822
    %v862 = vunpack.c.l.b16 %v823
    %v863 = vunpack.c.l.b16 %v824
    %v864 = vunpack.c.l.b16 %v825
    %v865 = vpack.c.b16 %v850, %v849
    %v866 = vpack.c.b16 %v852, %v851
    %v867 = vpack.c.b16 %v854, %v853
    %v868 = vpack.c.b16 %v856, %v855
    %v869 = vpack.c.b16 %v858, %v857
    %v870 = vpack.c.b16 %v860, %v859
    %v871 = vpack.c.b16 %v862, %v861
    %v872 = vpack.c.b16 %v864, %v863
    %881 = vmatprep.subr.bf16.mxu0 0
    %882 = vmatpush1.bf16.msra.mxu0 %v865
    %883 = vmatprep.subr.bf16.mxu0 0
    %884 = vmatpush1.bf16.msra.mxu0 %v866
    %885 = vmatprep.subr.bf16.mxu0 0
    %886 = vmatpush1.bf16.msra.mxu0 %v867
    %887 = vmatprep.subr.bf16.mxu0 0
    %888 = vmatpush1.bf16.msra.mxu0 %v868
    %889 = vmatprep.subr.bf16.mxu0 0
    %890 = vmatpush1.bf16.msra.mxu0 %v869
    %891 = vmatprep.subr.bf16.mxu0 0
    %892 = vmatpush1.bf16.msra.mxu0 %v870
    %893 = vmatprep.subr.bf16.mxu0 0
    %894 = vmatpush1.bf16.msra.mxu0 %v871
    %895 = vmatprep.subr.bf16.mxu0 0
    %896 = vmatpush1.bf16.msra.mxu0 %v872
    %897 = vmatprep.subr.bf16.mxu0 0
    %898 = vmatpush1.bf16.msra.mxu0 0
    %899 = vmatprep.subr.bf16.mxu0 0
    %900 = vmatpush1.bf16.msra.mxu0 0
    %901 = vmatprep.subr.bf16.mxu0 0
    %902 = vmatpush1.bf16.msra.mxu0 0
    %903 = vmatprep.subr.bf16.mxu0 0
    %904 = vmatpush1.bf16.msra.mxu0 0
    %905 = vmatprep.subr.bf16.mxu0 0
    %906 = vmatpush1.bf16.msra.mxu0 0
    %907 = vmatprep.subr.bf16.mxu0 0
    %908 = vmatpush1.bf16.msra.mxu0 0
    %909 = vmatprep.subr.bf16.mxu0 0
    %910 = vmatpush1.bf16.msra.mxu0 0
    %911 = vmatprep.subr.bf16.mxu0 0
    %912 = vmatpush1.bf16.msra.mxu0 0
    %913 = vmatprep.mubr.bf16.mxu0 0
    %914 = vmatmul.mubr.bf16.gmra.mrb[0].mxu0 %v809
    %v915 = vpop.f32.mrb[0].mxu0
    %v916 = vadd.f32 %v831, %v915
    %v917 = vpop.f32.mrb[0].mxu0
    %v918 = vpop.f32.mrb[0].mxu0
    %v919 = vadd.f32 %v831, %v918
    %v920 = vpop.f32.mrb[0].mxu0
    %921 = vdwg.mxu0
    %v922 = vadd.f32 %v52, %v916
    %v923 = vadd.f32 %v53, %v919
    %924 = vst.msk [vmem:[#allocation2] sm:$0xff] %vm54, %v922
    %925 = vst.msk [vmem:[#allocation2 + $0x8] sm:$0xff] %vm54, %v923
    // Predicated region
    $region62: #{trafo_block.1} parent=1 // pred_check
      _
    $region63: #{trafo_block.1} parent=1 // pred_check_branch
      %927 = sbr.rel (0) target = $region65
    $region64: #{trafo_block.1} parent=1 // pred_region
      %s929 = ssub.s32 256, 256
      %930 = vsyncadd [#allocation3], %s929
      %s931 = sshll.u32 [#allocation2], 4
      %s932 = int_to_ptr.vmem [resolvable:$true] %s931
      %937 = dma.vmem_to_hbm [thread:$0]  %s932, 256, %s15, [#allocation3], 128, 128, 8
    $region65: #{trafo_block.1} parent=1 // pred_fallthru
      _
    // Predicated region
    $region66: #{trafo_block.1} parent=1 // pred_check
      _
    $region67: #{trafo_block.1} parent=1 // pred_check_branch
      %939 = sbr.rel (0) target = $region69
    $region68: #{trafo_block.1} parent=1 // pred_region
      %940 = dma.done [#allocation3], 256
    $region69: #{trafo_block.1} parent=1 // pred_fallthru
      _
    %941 = vsyncpa [#allocation3], 1

</llo_original>
